<compile_context>
chip_gen: v7x
topology: tpu7x:2x2x1
jax: 0.10.0
libtpu: 0.0.40
codegen_flags: <defaults>
</compile_context>

<pallas_src>
import functools

import jax
import jax.numpy as jnp
from jax import lax
from jax.experimental import pallas as pl
from jax.experimental.pallas import tpu as pltpu

_LANES = 128


def _cdiv(a, b):
    return -(-a // b)


def _round_up(a, m):
    return _cdiv(a, m) * m


def _choose_tiling(rows_total, per_row_bytes, n_samples, row_align):
    """Balanced (tile_rows, num_tiles) targeting ~6 MiB of inputs per grid step."""
    budget_bytes = 6 << 20          # per-step input bytes (Pallas double-buffers)
    max_rows = 2048                 # cap per-step footprint for v7x's 64 MiB/TC VMEM
    tr = budget_bytes // max(per_row_bytes, 1)
    tr = max(row_align, min(max_rows, tr))
    tr = (tr // row_align) * row_align
    if tr >= rows_total:
        tile_rows, num_tiles = rows_total, 1
    else:
        num_tiles = _cdiv(rows_total, tr)
        tile_rows = _round_up(_cdiv(rows_total, num_tiles), row_align)
        num_tiles = _cdiv(rows_total, tile_rows)
    # v7x megacore: make sure the (N, tiles) grid has at least 2 steps.
    if n_samples * num_tiles < 2 and rows_total >= 2 * row_align:
        tile_rows = _round_up(_cdiv(rows_total, 2), row_align)
        num_tiles = _cdiv(rows_total, tile_rows)
    return tile_rows, num_tiles


def _partials_kernel(out_ref, regt_ref, segt_ref, part_ref, *,
                     c_reg, tile_rows, cols, rows_total, num_tiles):
    """One (sample, row-tile) per grid step; emits 5 lane-resident partial sums.

    out_ref  : (1, C, TR, COLS)      model output (seg logits ch 0:2, reg ch 2:)
    regt_ref : (1, c_reg, TR, COLS)  regression target
    segt_ref : (1, 1, TR, COLS)      seg class-index target {0, 1}
    part_ref : (1, 1, 8, COLS)       sublanes 0..4 = [reg_sq, inter, pred, ground, ce]
    """
    t = pl.program_id(1)

    def compute(mask_rows):
        s0 = out_ref[0, 0].astype(jnp.float32)                 # (TR, COLS)
        s1 = out_ref[0, 1].astype(jnp.float32)
        reg_o = out_ref[0, 2:2 + c_reg].astype(jnp.float32)    # (c_reg, TR, COLS)
        reg_t = regt_ref[0].astype(jnp.float32)
        fg = segt_ref[0, 0] == 1                               # (TR, COLS) bool

        if mask_rows:
            row = lax.broadcasted_iota(jnp.int32, (tile_rows, cols), 0)
            valid = (t * tile_rows + row) < rows_total
            fg = fg & valid

        # ---- MSE partial (mask with select BEFORE the square: ragged rows hold garbage)
        diff = reg_o - reg_t
        if mask_rows:
            diff = jnp.where(valid[None], diff, 0.0)
        reg_sq_v = jnp.sum(jnp.sum(diff * diff, axis=0), axis=0)     # (COLS,)

        # ---- 2-class softmax / CE via the logit difference: 1 exp + 1 log + 1 rcp ----
        d = s1 - s0
        e = jnp.exp(-jnp.abs(d))                # exp(-|d|) in (0, 1]
        z = 1.0 + e
        inv = pl.reciprocal(z, approx=True)
        inv = inv * (2.0 - z * inv)             # one Newton step -> ~f32-exact
        p_fg = jnp.where(d >= 0, 1.0, e) * inv  # sigmoid(d) == softmax fg probability
        log1pe = jnp.log(z)
        ce = jnp.maximum(jnp.where(fg, -d, d), 0.0) + log1pe   # -log p[target]

        t_fg = fg.astype(jnp.float32)           # fg already row-masked above
        if mask_rows:
            p_fg = jnp.where(valid, p_fg, 0.0)
            ce = jnp.where(valid, ce, 0.0)

        # ---- lane-resident partial sums (sublane-axis reduce only) ----
        inter_v = jnp.sum(p_fg * t_fg, axis=0)
        pred_v = jnp.sum(p_fg, axis=0)
        ground_v = jnp.sum(t_fg, axis=0)
        ce_v = jnp.sum(ce, axis=0)

        part_ref[0, 0] = jnp.zeros((8, cols), jnp.float32)
        part_ref[0, 0, 0] = reg_sq_v
        part_ref[0, 0, 1] = inter_v
        part_ref[0, 0, 2] = pred_v
        part_ref[0, 0, 3] = ground_v
        part_ref[0, 0, 4] = ce_v

    ragged = tile_rows * num_tiles != rows_total
    if not ragged:
        compute(mask_rows=False)
    elif num_tiles == 1:
        compute(mask_rows=True)
    else:
        @pl.when(t == num_tiles - 1)
        def _():
            compute(mask_rows=True)

        @pl.when(t != num_tiles - 1)
        def _():
            compute(mask_rows=False)


@jax.jit
def joint_loss(output_nchw, reg_target_nchw, seg_target_nchw, log_sigmas):
    """output_nchw: [N, C, H, W], C = 2 seg-logit channels + C_reg regression channels."""
    n, c, h, w = output_nchw.shape
    c_reg = c - 2
    if c_reg < 1:
        raise ValueError("JointLoss expects at least one regression channel (C >= 3).")
    s = h * w

    # Zero-copy spatial layout: lane-dense (S/128, 128) when possible, else native (H, W).
    if s % _LANES == 0:
        rows_total, cols = s // _LANES, _LANES
    else:
        rows_total, cols = h, w

    def _view(x):                                   # free reshape, no HBM copy
        return x.reshape(x.shape[0], x.shape[1], rows_total, cols)

    out_r = _view(output_nchw)
    regt_r = _view(reg_target_nchw)
    segt_r = _view(seg_target_nchw)

    cols_pad = _round_up(cols, _LANES)
    per_row_bytes = cols_pad * (c * output_nchw.dtype.itemsize
                                + c_reg * reg_target_nchw.dtype.itemsize
                                + seg_target_nchw.dtype.itemsize)
    min_itemsize = min(output_nchw.dtype.itemsize, reg_target_nchw.dtype.itemsize,
                       seg_target_nchw.dtype.itemsize)
    row_align = {4: 8, 2: 16, 1: 32}.get(int(min_itemsize), 32)
    tile_rows, num_tiles = _choose_tiling(rows_total, per_row_bytes, n, row_align)

    kernel = functools.partial(
        _partials_kernel, c_reg=c_reg, tile_rows=tile_rows, cols=cols,
        rows_total=rows_total, num_tiles=num_tiles)

    partials = pl.pallas_call(
        kernel,
        out_shape=jax.ShapeDtypeStruct((n, num_tiles, 8, cols), jnp.float32),
        grid=(n, num_tiles),
        in_specs=[
            pl.BlockSpec((1, c, tile_rows, cols), lambda i, j: (i, 0, j, 0)),
            pl.BlockSpec((1, c_reg, tile_rows, cols), lambda i, j: (i, 0, j, 0)),
            pl.BlockSpec((1, 1, tile_rows, cols), lambda i, j: (i, 0, j, 0)),
        ],
        out_specs=pl.BlockSpec((1, 1, 8, cols), lambda i, j: (i, j, 0, 0)),
        compiler_params=pltpu.CompilerParams(
            dimension_semantics=("parallel", "parallel")),
    )(out_r, regt_r, segt_r)

    # Tiny O(N * num_tiles * cols) combine in plain JAX (grid stays fully parallel).
    per_sample = jnp.sum(partials[:, :, :5, :], axis=(1, 3))       # (N, 5)
    reg_sq = per_sample[:, 0]
    inter = per_sample[:, 1]
    pred_o = per_sample[:, 2]
    ground_o = per_sample[:, 3]
    ce_sum = per_sample[:, 4]

    reg_loss = jnp.sum(reg_sq) / (n * c_reg * s)
    dice_loss = jnp.mean(1.0 - (2.0 * inter + 1e-5) / (ground_o + pred_o + 1e-5))
    ce_loss = jnp.sum(ce_sum) / (n * s)
    seg_loss = dice_loss + ce_loss

    ls_seg = log_sigmas[0]
    ls_reg = log_sigmas[1]
    total = (jnp.exp(-2.0 * ls_seg) * seg_loss
             + jnp.exp(-2.0 * ls_reg) * reg_loss
             + ls_seg + ls_reg)
    # TODO(synk): wandb logging / .item() side effects have no Pallas equivalent.
    return total, seg_loss, reg_loss


def _reference(output, reg_t, seg_t, log_sigmas):
    """Pure-JAX reference mirroring MONAI DiceCELoss + MSE + uncertainty weighting."""
    seg = output[:, 0:2].astype(jnp.float32)
    reg = output[:, 2:].astype(jnp.float32)
    reg_loss = jnp.mean((reg - reg_t) ** 2)

    p = jax.nn.softmax(seg, axis=1)
    onehot = jax.nn.one_hot(seg_t[:, 0], 2, axis=1)          # (N, 2, H, W)
    p_fg, t_fg = p[:, 1], onehot[:, 1]
    inter = jnp.sum(p_fg * t_fg, axis=(1, 2))
    pred_o = jnp.sum(p_fg, axis=(1, 2))
    ground_o = jnp.sum(t_fg, axis=(1, 2))
    dice_loss = jnp.mean(1.0 - (2.0 * inter + 1e-5) / (ground_o + pred_o + 1e-5))

    logp = jax.nn.log_softmax(seg, axis=1)
    ce_loss = -jnp.mean(jnp.sum(onehot * logp, axis=1))
    seg_loss = dice_loss + ce_loss

    ls_seg, ls_reg = log_sigmas[0], log_sigmas[1]
    total = (jnp.exp(-2.0 * ls_seg) * seg_loss
             + jnp.exp(-2.0 * ls_reg) * reg_loss + ls_seg + ls_reg)
    return total, seg_loss, reg_loss


if __name__ == "__main__":
    key = jax.random.PRNGKey(0)
    k1, k2, k3 = jax.random.split(key, 3)

    N, C, H, W = 2, 3, 16, 16            # 2 seg channels + 1 regression channel
    output = jax.random.normal(k1, (N, C, H, W), dtype=jnp.float32)           # model(data)
    reg_target = jax.random.normal(k2, (N, C - 2, H, W), dtype=jnp.float32)   # targets[0]
    seg_target = jax.random.randint(k3, (N, 1, H, W), 0, 2, dtype=jnp.int32)  # targets[1]

    # learn_coeff=True path; log sigmas deterministically initialized to 0.0
    log_sigmas = jnp.zeros((2,), dtype=jnp.float32)

    total, seg_loss, reg_loss = joint_loss(output, reg_target, seg_target, log_sigmas)
    jax.block_until_ready(total)

    ref_total, ref_seg, ref_reg = _reference(output, reg_target, seg_target, log_sigmas)
    assert jnp.allclose(total, ref_total, rtol=1e-4, atol=1e-4), (total, ref_total)
    assert jnp.allclose(seg_loss, ref_seg, rtol=1e-4, atol=1e-4), (seg_loss, ref_seg)
    assert jnp.allclose(reg_loss, ref_reg, rtol=1e-4, atol=1e-4), (reg_loss, ref_reg)

    print("KERNEL_OK")
</pallas_src>

<mosaic_0001>
module attributes {stable_mosaic.version = 11 : i64} {
  func.func @_partials_kernel(%arg0: i32, %arg1: i32, %arg2: memref<1x3x2x128xf32, #tpu.memory_space<vmem>>, %arg3: memref<1x1x2x128xf32, #tpu.memory_space<vmem>>, %arg4: memref<1x1x2x128xi32, #tpu.memory_space<vmem>>, %arg5: memref<1x1x8x128xf32, #tpu.memory_space<vmem>>) attributes {dimension_semantics = [#tpu.dimension_semantics<parallel>, #tpu.dimension_semantics<parallel>], iteration_bounds = array<i64: 2, 1>, scalar_prefetch = 0 : i64, scratch_operands = 0 : i64, tpu.core_type = #tpu.core_type<tc>, window_params = [{transform_indices = @transform_0, window_bounds = array<i64: 1, 3, 2, 128>}, {transform_indices = @transform_1, window_bounds = array<i64: 1, 1, 2, 128>}, {transform_indices = @transform_2, window_bounds = array<i64: 1, 1, 2, 128>}, {transform_indices = @transform_3, window_bounds = array<i64: 1, 1, 8, 128>}]} {
    %c0 = arith.constant 0 : index
    %c0_0 = arith.constant 0 : index
    %c0_1 = arith.constant 0 : index
    %c0_2 = arith.constant 0 : index
    %0 = vector.load %arg2[%c0, %c0_0, %c0_1, %c0_2] : memref<1x3x2x128xf32, #tpu.memory_space<vmem>>, vector<1x1x2x128xf32>
    %1 = vector.shape_cast %0 : vector<1x1x2x128xf32> to vector<2x128xf32>
    %c0_3 = arith.constant 0 : index
    %c1 = arith.constant 1 : index
    %c0_4 = arith.constant 0 : index
    %c0_5 = arith.constant 0 : index
    %2 = vector.load %arg2[%c0_3, %c1, %c0_4, %c0_5] : memref<1x3x2x128xf32, #tpu.memory_space<vmem>>, vector<1x1x2x128xf32>
    %3 = vector.shape_cast %2 : vector<1x1x2x128xf32> to vector<2x128xf32>
    %c0_6 = arith.constant 0 : index
    %c2 = arith.constant 2 : index
    %c0_7 = arith.constant 0 : index
    %c0_8 = arith.constant 0 : index
    %4 = vector.load %arg2[%c0_6, %c2, %c0_7, %c0_8] : memref<1x3x2x128xf32, #tpu.memory_space<vmem>>, vector<1x1x2x128xf32>
    %5 = vector.shape_cast %4 : vector<1x1x2x128xf32> to vector<1x2x128xf32>
    %c0_9 = arith.constant 0 : index
    %c0_10 = arith.constant 0 : index
    %c0_11 = arith.constant 0 : index
    %c0_12 = arith.constant 0 : index
    %6 = vector.load %arg3[%c0_9, %c0_10, %c0_11, %c0_12] : memref<1x1x2x128xf32, #tpu.memory_space<vmem>>, vector<1x1x2x128xf32>
    %7 = vector.shape_cast %6 : vector<1x1x2x128xf32> to vector<1x2x128xf32>
    %c0_13 = arith.constant 0 : index
    %c0_14 = arith.constant 0 : index
    %c0_15 = arith.constant 0 : index
    %c0_16 = arith.constant 0 : index
    %8 = vector.load %arg4[%c0_13, %c0_14, %c0_15, %c0_16] : memref<1x1x2x128xi32, #tpu.memory_space<vmem>>, vector<1x1x2x128xi32>
    %9 = vector.shape_cast %8 : vector<1x1x2x128xi32> to vector<2x128xi32>
    %c1_i32 = arith.constant 1 : i32
    %10 = vector.broadcast %c1_i32 : i32 to vector<2x128xi32>
    %11 = arith.cmpi eq, %9, %10 : vector<2x128xi32>
    %12 = arith.subf %5, %7 : vector<1x2x128xf32>
    %13 = arith.mulf %12, %12 : vector<1x2x128xf32>
    %cst = arith.constant dense<0.000000e+00> : vector<2x128xf32>
    %14 = vector.multi_reduction <add>, %13, %cst [0] : vector<1x2x128xf32> to vector<2x128xf32>
    %cst_17 = arith.constant dense<0.000000e+00> : vector<128xf32>
    %15 = vector.multi_reduction <add>, %14, %cst_17 [0] : vector<2x128xf32> to vector<128xf32>
    %16 = arith.subf %3, %1 : vector<2x128xf32>
    %17 = math.absf %16 : vector<2x128xf32>
    %cst_18 = arith.constant 0.000000e+00 : f32
    %18 = vector.broadcast %cst_18 : f32 to vector<2x128xf32>
    %19 = arith.subf %18, %17 : vector<2x128xf32>
    %20 = math.exp %19 : vector<2x128xf32>
    %cst_19 = arith.constant 1.000000e+00 : f32
    %21 = vector.broadcast %cst_19 : f32 to vector<2x128xf32>
    %22 = arith.addf %21, %20 : vector<2x128xf32>
    %23 = tpu.reciprocal %22 {approx = true} : vector<2x128xf32> -> vector<2x128xf32>
    %24 = arith.mulf %22, %23 : vector<2x128xf32>
    %cst_20 = arith.constant 2.000000e+00 : f32
    %25 = vector.broadcast %cst_20 : f32 to vector<2x128xf32>
    %26 = arith.subf %25, %24 : vector<2x128xf32>
    %27 = arith.mulf %23, %26 : vector<2x128xf32>
    %cst_21 = arith.constant 0.000000e+00 : f32
    %28 = vector.broadcast %cst_21 : f32 to vector<2x128xf32>
    %29 = arith.cmpf oge, %16, %28 : vector<2x128xf32>
    %cst_22 = arith.constant 1.000000e+00 : f32
    %30 = vector.broadcast %cst_22 : f32 to vector<2x128xf32>
    %31 = arith.select %29, %30, %20 : vector<2x128xi1>, vector<2x128xf32>
    %32 = arith.mulf %31, %27 : vector<2x128xf32>
    %33 = math.log %22 : vector<2x128xf32>
    %cst_23 = arith.constant 0.000000e+00 : f32
    %34 = vector.broadcast %cst_23 : f32 to vector<2x128xf32>
    %35 = arith.subf %34, %16 : vector<2x128xf32>
    %36 = arith.select %11, %35, %16 : vector<2x128xi1>, vector<2x128xf32>
    %cst_24 = arith.constant 0.000000e+00 : f32
    %37 = vector.broadcast %cst_24 : f32 to vector<2x128xf32>
    %38 = arith.maximumf %36, %37 : vector<2x128xf32>
    %39 = arith.addf %38, %33 : vector<2x128xf32>
    %40 = arith.extui %11 : vector<2x128xi1> to vector<2x128xi32>
    %41 = arith.sitofp %40 : vector<2x128xi32> to vector<2x128xf32>
    %42 = arith.mulf %32, %41 : vector<2x128xf32>
    %cst_25 = arith.constant dense<0.000000e+00> : vector<128xf32>
    %43 = vector.multi_reduction <add>, %42, %cst_25 [0] : vector<2x128xf32> to vector<128xf32>
    %cst_26 = arith.constant dense<0.000000e+00> : vector<128xf32>
    %44 = vector.multi_reduction <add>, %32, %cst_26 [0] : vector<2x128xf32> to vector<128xf32>
    %cst_27 = arith.constant dense<0.000000e+00> : vector<128xf32>
    %45 = vector.multi_reduction <add>, %41, %cst_27 [0] : vector<2x128xf32> to vector<128xf32>
    %cst_28 = arith.constant dense<0.000000e+00> : vector<128xf32>
    %46 = vector.multi_reduction <add>, %39, %cst_28 [0] : vector<2x128xf32> to vector<128xf32>
    %cst_29 = arith.constant 0.000000e+00 : f32
    %47 = vector.broadcast %cst_29 : f32 to vector<8x128xf32>
    %c0_30 = arith.constant 0 : index
    %c0_31 = arith.constant 0 : index
    %c0_32 = arith.constant 0 : index
    %c0_33 = arith.constant 0 : index
    %48 = vector.load %arg5[%c0_30, %c0_31, %c0_32, %c0_33] : memref<1x1x8x128xf32, #tpu.memory_space<vmem>>, vector<1x1x8x128xf32>
    %49 = vector.shape_cast %48 : vector<1x1x8x128xf32> to vector<8x128xf32>
    %50 = vector.shape_cast %47 : vector<8x128xf32> to vector<1x1x8x128xf32>
    tpu.vector_store %arg5[%c0_30, %c0_31, %c0_32, %c0_33], %50 {strides = array<i32>} : memref<1x1x8x128xf32, #tpu.memory_space<vmem>>, vector<1x1x8x128xf32>,
    %c0_34 = arith.constant 0 : index
    %c0_35 = arith.constant 0 : index
    %c0_36 = arith.constant 0 : index
    %c0_37 = arith.constant 0 : index
    %51 = vector.load %arg5[%c0_34, %c0_35, %c0_36, %c0_37] : memref<1x1x8x128xf32, #tpu.memory_space<vmem>>, vector<1x1x1x128xf32>
    %52 = vector.shape_cast %51 : vector<1x1x1x128xf32> to vector<128xf32>
    %53 = vector.shape_cast %15 : vector<128xf32> to vector<1x1x1x128xf32>
    tpu.vector_store %arg5[%c0_34, %c0_35, %c0_36, %c0_37], %53 {strides = array<i32>} : memref<1x1x8x128xf32, #tpu.memory_space<vmem>>, vector<1x1x1x128xf32>,
    %c0_38 = arith.constant 0 : index
    %c0_39 = arith.constant 0 : index
    %c1_40 = arith.constant 1 : index
    %c0_41 = arith.constant 0 : index
    %54 = vector.load %arg5[%c0_38, %c0_39, %c1_40, %c0_41] : memref<1x1x8x128xf32, #tpu.memory_space<vmem>>, vector<1x1x1x128xf32>
    %55 = vector.shape_cast %54 : vector<1x1x1x128xf32> to vector<128xf32>
    %56 = vector.shape_cast %43 : vector<128xf32> to vector<1x1x1x128xf32>
    tpu.vector_store %arg5[%c0_38, %c0_39, %c1_40, %c0_41], %56 {strides = array<i32>} : memref<1x1x8x128xf32, #tpu.memory_space<vmem>>, vector<1x1x1x128xf32>,
    %c0_42 = arith.constant 0 : index
    %c0_43 = arith.constant 0 : index
    %c2_44 = arith.constant 2 : index
    %c0_45 = arith.constant 0 : index
    %57 = vector.load %arg5[%c0_42, %c0_43, %c2_44, %c0_45] : memref<1x1x8x128xf32, #tpu.memory_space<vmem>>, vector<1x1x1x128xf32>
    %58 = vector.shape_cast %57 : vector<1x1x1x128xf32> to vector<128xf32>
    %59 = vector.shape_cast %44 : vector<128xf32> to vector<1x1x1x128xf32>
    tpu.vector_store %arg5[%c0_42, %c0_43, %c2_44, %c0_45], %59 {strides = array<i32>} : memref<1x1x8x128xf32, #tpu.memory_space<vmem>>, vector<1x1x1x128xf32>,
    %c0_46 = arith.constant 0 : index
    %c0_47 = arith.constant 0 : index
    %c3 = arith.constant 3 : index
    %c0_48 = arith.constant 0 : index
    %60 = vector.load %arg5[%c0_46, %c0_47, %c3, %c0_48] : memref<1x1x8x128xf32, #tpu.memory_space<vmem>>, vector<1x1x1x128xf32>
    %61 = vector.shape_cast %60 : vector<1x1x1x128xf32> to vector<128xf32>
    %62 = vector.shape_cast %45 : vector<128xf32> to vector<1x1x1x128xf32>
    tpu.vector_store %arg5[%c0_46, %c0_47, %c3, %c0_48], %62 {strides = array<i32>} : memref<1x1x8x128xf32, #tpu.memory_space<vmem>>, vector<1x1x1x128xf32>,
    %c0_49 = arith.constant 0 : index
    %c0_50 = arith.constant 0 : index
    %c4 = arith.constant 4 : index
    %c0_51 = arith.constant 0 : index
    %63 = vector.load %arg5[%c0_49, %c0_50, %c4, %c0_51] : memref<1x1x8x128xf32, #tpu.memory_space<vmem>>, vector<1x1x1x128xf32>
    %64 = vector.shape_cast %63 : vector<1x1x1x128xf32> to vector<128xf32>
    %65 = vector.shape_cast %46 : vector<128xf32> to vector<1x1x1x128xf32>
    tpu.vector_store %arg5[%c0_49, %c0_50, %c4, %c0_51], %65 {strides = array<i32>} : memref<1x1x8x128xf32, #tpu.memory_space<vmem>>, vector<1x1x1x128xf32>,
    return
  }
  func.func @transform_0(%arg0: i32, %arg1: i32) -> (i32, i32, i32, i32) {
    %c0_i32 = arith.constant 0 : i32
    %c0_i32_0 = arith.constant 0 : i32
    %c0_i32_1 = arith.constant 0 : i32
    return %arg0, %c0_i32, %arg1, %c0_i32_0 : i32, i32, i32, i32
  }
  func.func @transform_1(%arg0: i32, %arg1: i32) -> (i32, i32, i32, i32) {
    %c0_i32 = arith.constant 0 : i32
    %c0_i32_0 = arith.constant 0 : i32
    %c0_i32_1 = arith.constant 0 : i32
    return %arg0, %c0_i32, %arg1, %c0_i32_0 : i32, i32, i32, i32
  }
  func.func @transform_2(%arg0: i32, %arg1: i32) -> (i32, i32, i32, i32) {
    %c0_i32 = arith.constant 0 : i32
    %c0_i32_0 = arith.constant 0 : i32
    %c0_i32_1 = arith.constant 0 : i32
    return %arg0, %c0_i32, %arg1, %c0_i32_0 : i32, i32, i32, i32
  }
  func.func @transform_3(%arg0: i32, %arg1: i32) -> (i32, i32, i32, i32) {
    %c0_i32 = arith.constant 0 : i32
    %c0_i32_0 = arith.constant 0 : i32
    %c0_i32_1 = arith.constant 0 : i32
    return %arg0, %arg1, %c0_i32, %c0_i32_0 : i32, i32, i32, i32
  }
}

</mosaic_0001>

<llo_original>
// kernel: joint_loss.1
$region0: #{joint_loss.1}
  #allocation0 [shape = 'u32[]', space=smem, size = 0x4, offset = 0x4, fixed_abs, tag = 'smem constant byte address 0x4 - core index']
  #allocation1 [shape = 'u32[144,128]{1,0:T(1,128)}', space=vmem, size = 0x12000, scoped, tag = 'internal scratch']
  %s0 = inlined_call_operand.vmem [shape: f32[2,3,2,128], index: 0, kind: input, shape index: {}]
  %s1 = inlined_call_operand.vmem [shape: f32[2,1,2,128], index: 1, kind: input, shape index: {}]
  %s2 = inlined_call_operand.vmem [shape: s32[2,1,2,128], index: 2, kind: input, shape index: {}]
  %s3 = inlined_call_operand.vmem [shape: f32[2,1,8,128], index: 3, kind: output, shape index: {}]
  %s4 = sld [smem:[#allocation0]]
  $region45: #{joint_loss.1} parent=0
    _
  %s6 = ssub.s32 1, %s4
  %s7 = scalar_select 0, %s6, %s4
  loop: start=0, step=1, limit=4
  $region2: #{joint_loss.1} parent=0 // loop_pre_header
    _
  $region3: #{joint_loss.1} parent=0 // loop_header
    %s9 = sphi 0, %s13
    %p10 = scmp.ge.s32.totalorder %s9, 4
    %s16 = sphi 0, %s28
    %s17 = sphi 0, %s24
    %s18 = sphi 0, %s16
    %s19 = sphi 0, %s17
    %s20 = sphi 0, %s18
    %s21 = sphi 0, %s19
    %s33 = sphi 0, %s35
    %s36 = sphi 0, %s33
    %s37 = sphi 0, %s36
    %s53 = sphi 0, %s37
    %s61 = sphi 0, %s63
    %s64 = sphi 0, %s61
    %s65 = sphi 0, %s64
    %s81 = sphi 0, %s65
    %s89 = sphi 0, %s91
    %s92 = sphi 0, %s89
    %s93 = sphi 0, %s92
    %s109 = sphi 0, %s93
    %s117 = sphi 0, %s119
    %s120 = sphi 0, %s117
    %s121 = sphi 0, %s120
    %s137 = sphi 0, %s121
  $region4: #{joint_loss.1} parent=0 // loop_header_branch
    %12 = sbr.rel (%p10) target = $region8
  $region5: #{joint_loss.1} parent=0 // loop_body
    %s14 = ssub.s32 %s9, 1
    %s15 = ssub.s32 %s9, 2
    %s22 = sadd.s32 1, %s17
    %p23 = scmp.ge.s32.totalorder %s22, 1
    %s24 = scalar_select %p23, 0, %s22
    %s25 = sadd.s32 1, %s16
    %s26 = scalar_select %p23, %s25, %s16
    %p27 = scmp.ge.s32.totalorder %s26, 2
    %s28 = scalar_select %p27, 0, %s26
    %s29 = ssub.s32 %s16, %s28
    %s30 = ssub.s32 %s17, %s24
    %s31 = sor.u32 %s29, %s30
    %p32 = scmp.eq.s32.totalorder %s31, 0
    %s34 = sadd.s32 %s33, 1
    %s35 = scalar_select %p32, %s33, %s34
    %p38 = pneg %p32
    %p39 = scmp.eq.s32.totalorder %s9, 1
    %p40 = por %p38, %p39
    %p41 = scmp.ne.s32.totalorder %s33, %s36
    %p42 = scmp.eq.s32.totalorder %s9, 0
    %p43 = por %p41, %p42
    %p44 = scmp.ne.s32.totalorder %s33, %s36
    %p45 = scmp.eq.s32.totalorder %s14, 1
    %p46 = por %p44, %p45
    %p47 = scmp.ne.s32.totalorder %s36, %s37
    %p48 = scmp.eq.s32.totalorder %s14, 0
    %p49 = por %p47, %p48
    %p50 = scmp.ne.s32.totalorder %s36, %s37
    %p51 = scmp.eq.s32.totalorder %s15, 1
    %p52 = por %p50, %p51
    %p54 = scmp.ne.s32.totalorder %s37, %s53
    %p55 = scmp.eq.s32.totalorder %s15, 0
    %p56 = por %p54, %p55
    %s57 = ssub.s32 %s16, %s28
    %s58 = ssub.s32 %s17, %s24
    %s59 = sor.u32 %s57, %s58
    %p60 = scmp.eq.s32.totalorder %s59, 0
    %s62 = sadd.s32 %s61, 1
    %s63 = scalar_select %p60, %s61, %s62
    %p66 = pneg %p60
    %p67 = scmp.eq.s32.totalorder %s9, 1
    %p68 = por %p66, %p67
    %p69 = scmp.ne.s32.totalorder %s61, %s64
    %p70 = scmp.eq.s32.totalorder %s9, 0
    %p71 = por %p69, %p70
    %p72 = scmp.ne.s32.totalorder %s61, %s64
    %p73 = scmp.eq.s32.totalorder %s14, 1
    %p74 = por %p72, %p73
    %p75 = scmp.ne.s32.totalorder %s64, %s65
    %p76 = scmp.eq.s32.totalorder %s14, 0
    %p77 = por %p75, %p76
    %p78 = scmp.ne.s32.totalorder %s64, %s65
    %p79 = scmp.eq.s32.totalorder %s15, 1
    %p80 = por %p78, %p79
    %p82 = scmp.ne.s32.totalorder %s65, %s81
    %p83 = scmp.eq.s32.totalorder %s15, 0
    %p84 = por %p82, %p83
    %s85 = ssub.s32 %s16, %s28
    %s86 = ssub.s32 %s17, %s24
    %s87 = sor.u32 %s85, %s86
    %p88 = scmp.eq.s32.totalorder %s87, 0
    %s90 = sadd.s32 %s89, 1
    %s91 = scalar_select %p88, %s89, %s90
    %p94 = pneg %p88
    %p95 = scmp.eq.s32.totalorder %s9, 1
    %p96 = por %p94, %p95
    %p97 = scmp.ne.s32.totalorder %s89, %s92
    %p98 = scmp.eq.s32.totalorder %s9, 0
    %p99 = por %p97, %p98
    %p100 = scmp.ne.s32.totalorder %s89, %s92
    %p101 = scmp.eq.s32.totalorder %s14, 1
    %p102 = por %p100, %p101
    %p103 = scmp.ne.s32.totalorder %s92, %s93
    %p104 = scmp.eq.s32.totalorder %s14, 0
    %p105 = por %p103, %p104
    %p106 = scmp.ne.s32.totalorder %s92, %s93
    %p107 = scmp.eq.s32.totalorder %s15, 1
    %p108 = por %p106, %p107
    %p110 = scmp.ne.s32.totalorder %s93, %s109
    %p111 = scmp.eq.s32.totalorder %s15, 0
    %p112 = por %p110, %p111
    %s113 = ssub.s32 %s16, %s28
    %s114 = ssub.s32 %s17, %s24
    %s115 = sor.u32 %s113, %s114
    %p116 = scmp.eq.s32.totalorder %s115, 0
    %s118 = sadd.s32 %s117, 1
    %s119 = scalar_select %p116, %s117, %s118
    %p122 = pneg %p116
    %p123 = scmp.eq.s32.totalorder %s9, 1
    %p124 = por %p122, %p123
    %p125 = scmp.ne.s32.totalorder %s117, %s120
    %p126 = scmp.eq.s32.totalorder %s9, 0
    %p127 = por %p125, %p126
    %p128 = scmp.ne.s32.totalorder %s117, %s120
    %p129 = scmp.eq.s32.totalorder %s14, 1
    %p130 = por %p128, %p129
    %p131 = scmp.ne.s32.totalorder %s120, %s121
    %p132 = scmp.eq.s32.totalorder %s14, 0
    %p133 = por %p131, %p132
    %p134 = scmp.ne.s32.totalorder %s120, %s121
    %p135 = scmp.eq.s32.totalorder %s15, 1
    %p136 = por %p134, %p135
    %p138 = scmp.ne.s32.totalorder %s121, %s137
    %p139 = scmp.eq.s32.totalorder %s15, 0
    %p140 = por %p138, %p139
    %p141 = scmp.le.s32.totalorder 1, %s9
    %p142 = scmp.lt.s32.totalorder %s9, 3
    %p143 = pnand %p141, %p142
    %p144 = pneg %p143
    // Predicated region
    $region9: #{joint_loss.1} parent=5 // pred_check
      _
    $region10: #{joint_loss.1} parent=5 // pred_check_branch
      %146 = sbr.rel (%p143) target = $region12
    $region11: #{joint_loss.1} parent=5 // pred_region
      %s147 = ssub.s32 %s9, 1
    $region12: #{joint_loss.1} parent=5 // pred_fallthru
      _
    %p148 = scmp.lt.s32.totalorder %s9, 2
    // Predicated region
    $region13: #{joint_loss.1} parent=5 // pred_check
      %p149 = pneg %p148
    $region14: #{joint_loss.1} parent=5 // pred_check_branch
      %151 = sbr.rel (%p149) target = $region16
    $region15: #{joint_loss.1} parent=5 // pred_region
      // Predicated region
      $region17: #{joint_loss.1} parent=15 // pred_check
        %p152 = pneg %p43
      $region18: #{joint_loss.1} parent=15 // pred_check_branch
        %154 = sbr.rel (%p152) target = $region20
      $region19: #{joint_loss.1} parent=15 // pred_region
        %p155 = scmp.lt.s32.totalorder %s16, 1
        %s156 = scalar_select %p155, %s16, 1
        %p157 = scmp.lt.s32.totalorder %s17, 0
        %s158 = scalar_select %p157, %s17, 0
        %s159 = smul.addr %s156, 3
        %s160 = sadd.s32 %s158, %s159
        %s161 = smul.addr %s160, 2
        %s162 = scalar_lea.vmem %s0, %s161
      $region20: #{joint_loss.1} parent=15 // pred_fallthru
        _
      // Predicated region
      $region21: #{joint_loss.1} parent=15 // pred_check
        %p163 = pneg %p71
      $region22: #{joint_loss.1} parent=15 // pred_check_branch
        %165 = sbr.rel (%p163) target = $region24
      $region23: #{joint_loss.1} parent=15 // pred_region
        %p166 = scmp.lt.s32.totalorder %s16, 1
        %s167 = scalar_select %p166, %s16, 1
        %p168 = scmp.lt.s32.totalorder %s17, 0
        %s169 = scalar_select %p168, %s17, 0
        %s170 = sadd.s32 %s169, %s167
        %s171 = smul.addr %s170, 2
        %s172 = scalar_lea.vmem %s1, %s171
      $region24: #{joint_loss.1} parent=15 // pred_fallthru
        _
      // Predicated region
      $region25: #{joint_loss.1} parent=15 // pred_check
        %p173 = pneg %p99
      $region26: #{joint_loss.1} parent=15 // pred_check_branch
        %175 = sbr.rel (%p173) target = $region28
      $region27: #{joint_loss.1} parent=15 // pred_region
        %p176 = scmp.lt.s32.totalorder %s16, 1
        %s177 = scalar_select %p176, %s16, 1
        %p178 = scmp.lt.s32.totalorder %s17, 0
        %s179 = scalar_select %p178, %s17, 0
        %s180 = sadd.s32 %s179, %s177
        %s181 = smul.addr %s180, 2
        %s182 = scalar_lea.vmem %s2, %s181
      $region28: #{joint_loss.1} parent=15 // pred_fallthru
        _
    $region16: #{joint_loss.1} parent=5 // pred_fallthru
      _
    %p183 = scmp.le.s32.totalorder 1, %s9
    %p184 = scmp.lt.s32.totalorder %s9, 3
    %p185 = pnand %p183, %p184
    %p186 = pneg %p185
    // Predicated region
    $region29: #{joint_loss.1} parent=5 // pred_check
      _
    $region30: #{joint_loss.1} parent=5 // pred_check_branch
      %188 = sbr.rel (%p185) target = $region32
    $region31: #{joint_loss.1} parent=5 // pred_region
      %s189 = ssub.s32 %s9, 1
      %p190 = scmp.lt.s32.totalorder %s18, 1
      %s191 = scalar_select %p190, %s18, 1
      %p192 = scmp.lt.s32.totalorder %s19, 0
      %s193 = scalar_select %p192, %s19, 0
      %s194 = smul.addr %s191, 3
      %s195 = sadd.s32 %s193, %s194
      %s196 = smul.addr %s195, 2
      %s197 = scalar_lea.vmem %s0, %s196
      %p198 = pneg %p49
      %p199 = pneg %p46
      %p200 = scmp.lt.s32.totalorder %s18, 1
      %s201 = scalar_select %p200, %s18, 1
      %p202 = scmp.lt.s32.totalorder %s19, 0
      %s203 = scalar_select %p202, %s19, 0
      %s204 = sadd.s32 %s203, %s201
      %s205 = smul.addr %s204, 2
      %s206 = scalar_lea.vmem %s1, %s205
      %p207 = pneg %p77
      %p208 = pneg %p74
      %p209 = scmp.lt.s32.totalorder %s18, 1
      %s210 = scalar_select %p209, %s18, 1
      %p211 = scmp.lt.s32.totalorder %s19, 0
      %s212 = scalar_select %p211, %s19, 0
      %s213 = sadd.s32 %s212, %s210
      %s214 = smul.addr %s213, 2
      %s215 = scalar_lea.vmem %s2, %s214
      %p216 = pneg %p105
      %p217 = pneg %p102
      %p218 = pneg %p133
      %p219 = pneg %p130
      %p220 = scmp.lt.s32.totalorder %s18, 1
      %s221 = scalar_select %p220, %s18, 1
      %p222 = scmp.lt.s32.totalorder %s19, 0
      %s223 = scalar_select %p222, %s19, 0
      %s224 = sadd.s32 %s223, %s221
      %s225 = smul.addr %s224, 8
      %s226 = scalar_lea.vmem %s3, %s225
      %p227 = scmp.lt.s32.totalorder %s18, 1
      %s228 = scalar_select %p227, %s18, 1
      %p229 = scmp.lt.s32.totalorder %s19, 0
      %s230 = scalar_select %p229, %s19, 0
      %s231 = smul.addr %s228, 3
      %s232 = sadd.s32 %s230, %s231
      %s233 = smul.addr %s232, 2
      %s234 = scalar_lea.vmem %s0, %s233
      %p235 = scmp.lt.s32.totalorder %s18, 1
      %s236 = scalar_select %p235, %s18, 1
      %p237 = scmp.lt.s32.totalorder %s19, 0
      %s238 = scalar_select %p237, %s19, 0
      %s239 = sadd.s32 %s238, %s236
      %s240 = smul.addr %s239, 2
      %s241 = scalar_lea.vmem %s1, %s240
      %p242 = scmp.lt.s32.totalorder %s18, 1
      %s243 = scalar_select %p242, %s18, 1
      %p244 = scmp.lt.s32.totalorder %s19, 0
      %s245 = scalar_select %p244, %s19, 0
      %s246 = sadd.s32 %s245, %s243
      %s247 = smul.addr %s246, 2
      %s248 = scalar_lea.vmem %s2, %s247
      %p249 = scmp.lt.s32.totalorder %s18, 1
      %s250 = scalar_select %p249, %s18, 1
      %p251 = scmp.lt.s32.totalorder %s19, 0
      %s252 = scalar_select %p251, %s19, 0
      %s253 = sadd.s32 %s252, %s250
      %s254 = smul.addr %s253, 8
      %s255 = scalar_lea.vmem %s3, %s254
      %v256 = vld [vmem:[%s234] sm:$0x3]
      %s257 = scalar_lea.vmem %s234, 2
      %v258 = vld [vmem:[%s257] sm:$0x3]
      %s259 = scalar_lea.vmem %s234, 4
      %v260 = vld [vmem:[%s259] sm:$0x3]
      %v261 = vld [vmem:[%s241] sm:$0x3]
      %v262 = vld [vmem:[%s248] sm:$0x3]
      %vm263 = vcmp.eq.s32.totalorder %v262, 1
      %v264 = vsub.f32 %v260, %v261
      %v265 = vmul.f32 %v264, %v264
      %v266 = vadd.f32 %v265, 0.0
      %vm267 = vcmask 1041408
      %v268 = vsel %vm267, %v266, 0.0
      %v269 = vrot.slane %v268, 4
      %v270 = vadd.f32 %v268, %v269
      %v271 = vrot.slane %v270, 2
      %v272 = vadd.f32 %v270, %v271
      %v273 = vrot.slane %v272, 1
      %v274 = vadd.f32 %v272, %v273
      %v275 = vsub.f32 %v258, %v256
      %v276 = vand.u32 2147483647, %v275
      %v277 = vsub.f32 0.0, %v276
      %v278 = vmul.f32 %v277, 1.442695
      %v279 = vpow.pop %v278
      %v280 = vadd.f32 %v279, 1.0
      %v281 = vrcp.pop %v280
      %v282 = vmul.f32 %v280, %v281
      %v283 = vsub.f32 2.0, %v282
      %v284 = vmul.f32 %v281, %v283
      %vm285 = vcmp.ge.f32.partialorder %v275, 0.0
      %v286 = vsel %vm285, 1.0, %v279
      %v287 = vmul.f32 %v286, %v284
      %v288 = vlog2.pop %v280
      %v289 = vmul.f32 %v288, 0.6931472
      %v290 = vsub.f32 0.0, %v275
      %v291 = vsel %vm263, %v290, %v275
      %v292 = vmax.f32 %v291, 0.0
      %v293 = vadd.f32 %v292, %v289
      %v294 = vsel %vm263, 1, 0
      %v295 = vcvt.s32.f32 %v294
      %v296 = vmul.f32 %v287, %v295
      %v297 = vsel %vm267, %v296, 0.0
      %v298 = vrot.slane %v297, 4
      %v299 = vadd.f32 %v297, %v298
      %v300 = vrot.slane %v299, 2
      %v301 = vadd.f32 %v299, %v300
      %v302 = vrot.slane %v301, 1
      %v303 = vadd.f32 %v301, %v302
      %v304 = vsel %vm267, %v287, 0.0
      %v305 = vrot.slane %v304, 4
      %v306 = vadd.f32 %v304, %v305
      %v307 = vrot.slane %v306, 2
      %v308 = vadd.f32 %v306, %v307
      %v309 = vrot.slane %v308, 1
      %v310 = vadd.f32 %v308, %v309
      %v311 = vsel %vm267, %v295, 0.0
      %v312 = vrot.slane %v311, 4
      %v313 = vadd.f32 %v311, %v312
      %v314 = vrot.slane %v313, 2
      %v315 = vadd.f32 %v313, %v314
      %v316 = vrot.slane %v315, 1
      %v317 = vadd.f32 %v315, %v316
      %v318 = vsel %vm267, %v293, 0.0
      %v319 = vrot.slane %v318, 4
      %v320 = vadd.f32 %v318, %v319
      %v321 = vrot.slane %v320, 2
      %v322 = vadd.f32 %v320, %v321
      %v323 = vrot.slane %v322, 1
      %v324 = vadd.f32 %v322, %v323
      %325 = vst [vmem:[%s255] sm:$0xff] 0.0
      %326 = vst [vmem:[%s255] sm:$0x1] %v274
      %327 = vst [vmem:[%s255 + $0x1] sm:$0x1] %v303
      %328 = vst [vmem:[%s255 + $0x2] sm:$0x1] %v310
      %329 = vst [vmem:[%s255 + $0x3] sm:$0x1] %v317
      %330 = vst [vmem:[%s255 + $0x4] sm:$0x1] %v324
      %p331 = scmp.lt.s32.totalorder %s18, 1
      %s332 = scalar_select %p331, %s18, 1
      %p333 = scmp.lt.s32.totalorder %s19, 0
      %s334 = scalar_select %p333, %s19, 0
      %s335 = sadd.s32 %s334, %s332
      %s336 = smul.addr %s335, 8
      %s337 = scalar_lea.vmem %s3, %s336
      // Predicated region
      $region33: #{joint_loss.1} parent=31 // pred_check
        %p338 = pneg %p130
      $region34: #{joint_loss.1} parent=31 // pred_check_branch
        %340 = sbr.rel (%p338) target = $region36
      $region35: #{joint_loss.1} parent=31 // pred_region
        _
      $region36: #{joint_loss.1} parent=31 // pred_fallthru
        _
    $region32: #{joint_loss.1} parent=5 // pred_fallthru
      _
    %p341 = scmp.le.s32.totalorder 2, %s9
    // Predicated region
    $region37: #{joint_loss.1} parent=5 // pred_check
      %p342 = pneg %p341
    $region38: #{joint_loss.1} parent=5 // pred_check_branch
      %344 = sbr.rel (%p342) target = $region40
    $region39: #{joint_loss.1} parent=5 // pred_region
      %s345 = ssub.s32 %s9, 2
      // Predicated region
      $region41: #{joint_loss.1} parent=39 // pred_check
        %p346 = pneg %p136
      $region42: #{joint_loss.1} parent=39 // pred_check_branch
        %348 = sbr.rel (%p346) target = $region44
      $region43: #{joint_loss.1} parent=39 // pred_region
        %p349 = scmp.lt.s32.totalorder %s20, 1
        %s350 = scalar_select %p349, %s20, 1
        %p351 = scmp.lt.s32.totalorder %s21, 0
        %s352 = scalar_select %p351, %s21, 0
        %s353 = sadd.s32 %s352, %s350
        %s354 = smul.addr %s353, 8
        %s355 = scalar_lea.vmem %s3, %s354
      $region44: #{joint_loss.1} parent=39 // pred_fallthru
        _
    $region40: #{joint_loss.1} parent=5 // pred_fallthru
      _
  $region6: #{joint_loss.1} parent=0 // loop_footer
    %s13 = sadd.s32 1, %s9
  $region7: #{joint_loss.1} parent=0 // loop_footer_branch
    %8 = sbr.rel target = $region3
  $region8: #{joint_loss.1} parent=0 // loop_exit
    _

</llo_original>
